<compile_context>
chip_gen: v7x
topology: tpu7x:2x2x1
jax: 0.10.0
libtpu: 0.0.40
codegen_flags: <defaults>
</compile_context>

<pallas_src>
import jax
import jax.numpy as jnp
from jax.experimental import pallas as pl
from jax.experimental.pallas import tpu as pltpu


def statis_attention_kernel(x_ref, w12k_ref, w3t_ref, b3_ref, prep_ref, o_ref):
    # x_ref : (bt, nc*ns) f32 -- flattened NCL rows: element [b, c*ns + l] = x[b, c, l]
    # w12k  : (nc*ns, ns)     -- kron(w12, I_ns): fused conv1∘conv2 rank-1 projection
    # w3t   : (ns, ns)        -- conv3 weight, transposed
    # b3    : (1, ns)         -- conv3 bias with the fused conv1/conv2 bias folded in
    # prep  : (ns, nc*ns)     -- 0/1 replication matrix: s[l] -> s_flat[c*ns + l]

    # fused conv1+conv2: h2[b, l] = sum_c w12[c] * x[b, c, l]
    h2 = jnp.dot(x_ref[...], w12k_ref[...],
                 preferred_element_type=jnp.float32)                      # (bt, ns)
    # conv3 (pointwise over the ns "stat" axis) + all biases
    h3 = jnp.dot(h2, w3t_ref[...],
                 preferred_element_type=jnp.float32) + b3_ref[...]        # (bt, ns)
    s = 1.0 / (1.0 + jnp.exp(-h3))                                        # sigmoid
    # replicate the per-position gate across all channels in flattened-NCL order
    s_flat = jnp.dot(s, prep_ref[...],
                     preferred_element_type=jnp.float32)                  # (bt, nc*ns)
    # re-read x right before the multiply (don't keep it live across the matmuls)
    o_ref[...] = x_ref[...] * s_flat


def _padded_vmem_bytes(rows, cols):
    return ((rows + 7) // 8 * 8) * ((cols + 127) // 128 * 128) * 4


def statis_attention(x_ncl, w1, b1, w2, b2, w3, b3, *, batch_block_bytes=2 << 20):
    """x_ncl: (B, nc, ns) like the PyTorch module (requires L == ns).
    Conv weights in PyTorch Conv1d layout: w1 (64, nc, 1), w2 (1, 64, 1),
    w3 (ns, ns, 1)."""
    B, nc, ns = x_ncl.shape
    F = nc * ns

    # free, row-major collapse -> last dim is lane-dense (no transpose, no copy)
    x_flat = x_ncl.reshape(B, F).astype(jnp.float32)

    # ---- weight preparation (small, weight-only; would be cached in practice) ----
    W1 = w1[:, :, 0].astype(jnp.float32)                       # (64, nc)
    W2 = w2[:, :, 0].astype(jnp.float32)                       # (1, 64)
    W3 = w3[:, :, 0].astype(jnp.float32)                       # (ns, ns)
    w3t = W3.T                                                  # (ns, ns)

    # rank-1 fusion of conv1+conv2
    w12 = (W2 @ W1).reshape(nc)                                 # (nc,)
    c0 = W2 @ b1.reshape(-1, 1).astype(jnp.float32) + b2.reshape(1, 1).astype(jnp.float32)

    # kron(w12, I_ns): x_flat @ w12k == h2 over the ns positions
    w12k = jnp.kron(w12.reshape(nc, 1), jnp.eye(ns, dtype=jnp.float32))   # (nc*ns, ns)
    # 0/1 replication matrix: s (bt, ns) @ prep -> s_flat (bt, nc*ns)
    prep = jnp.tile(jnp.eye(ns, dtype=jnp.float32), (1, nc))              # (ns, nc*ns)
    # fold the fused conv1/conv2 bias c0 through conv3 into its bias
    b3eff = b3.reshape(1, ns).astype(jnp.float32) + c0 * jnp.sum(w3t, axis=0, keepdims=True)

    # ---- batch tile: ~batch_block_bytes per input tile, multiple of 8 (or full B) ----
    row_bytes = F * 4
    bt = max(1, batch_block_bytes // row_bytes)
    if bt >= B:
        bt = B
    else:
        bt = max(8, (bt // 8) * 8)
        if bt >= B:
            bt = B
    grid = (pl.cdiv(B, bt),)

    # explicit VMEM budget: 2x double-buffered (in + out) tiles + resident weights
    vmem_bytes = 4 * _padded_vmem_bytes(bt, F)                  # x + out, 2 buffers each
    vmem_bytes += 2 * _padded_vmem_bytes(F, ns)                 # w12k
    vmem_bytes += 2 * _padded_vmem_bytes(ns, F)                 # prep
    vmem_bytes += 2 * _padded_vmem_bytes(ns, ns) + 2 * _padded_vmem_bytes(1, ns)
    vmem_bytes += 2 << 20                                       # slack
    vmem_bytes = int(min(max(vmem_bytes, 8 << 20), 32 << 20))

    out_flat = pl.pallas_call(
        statis_attention_kernel,
        out_shape=jax.ShapeDtypeStruct((B, F), jnp.float32),
        grid=grid,
        in_specs=[
            pl.BlockSpec((bt, F), lambda i: (i, 0)),            # x tile (pipelined)
            pl.BlockSpec((F, ns), lambda i: (0, 0)),            # w12k (resident)
            pl.BlockSpec((ns, ns), lambda i: (0, 0)),           # w3t
            pl.BlockSpec((1, ns), lambda i: (0, 0)),            # b3eff
            pl.BlockSpec((ns, F), lambda i: (0, 0)),            # prep
        ],
        out_specs=pl.BlockSpec((bt, F), lambda i: (i, 0)),
        compiler_params=pltpu.CompilerParams(
            dimension_semantics=("parallel",),
            vmem_limit_bytes=vmem_bytes,
        ),
    )(x_flat, w12k, w3t, b3eff, prep)

    return out_flat.reshape(B, nc, ns)                          # free reshape back to NCL


def reference(x, w1, b1, w2, b2, w3, b3):
    """Pure-JAX mirror of the PyTorch forward (dim=3 branch)."""
    B, nc, ns = x.shape
    hp = jax.lax.Precision.HIGHEST
    h1 = jnp.einsum('oc,bcl->bol', w1[:, :, 0], x, precision=hp) + b1[None, :, None]
    h2 = jnp.einsum('oc,bcl->bol', w2[:, :, 0], h1, precision=hp) + b2[None, :, None]
    a = h2.reshape(B, ns, 1)
    h3 = jnp.einsum('oc,bcl->bol', w3[:, :, 0], a, precision=hp) + b3[None, :, None]
    s = jax.nn.sigmoid(h3).reshape(B, 1, ns)
    return x * s


if __name__ == "__main__":
    # small shapes consistent with the module: nc channels, ns "stats" positions
    B, nc, ns, hidden = 16, 32, 5, 64

    key = jax.random.PRNGKey(0)
    kx, k1, k2, k3, k4, k5, k6 = jax.random.split(key, 7)

    x = jax.random.normal(kx, (B, nc, ns), dtype=jnp.float32)

    w1 = jax.random.uniform(k1, (hidden, nc, 1), jnp.float32, -1, 1) / jnp.sqrt(nc)
    b1 = jax.random.uniform(k2, (hidden,), jnp.float32, -1, 1) / jnp.sqrt(nc)
    w2 = jax.random.uniform(k3, (1, hidden, 1), jnp.float32, -1, 1) / jnp.sqrt(hidden)
    b2 = jax.random.uniform(k4, (1,), jnp.float32, -1, 1) / jnp.sqrt(hidden)
    w3 = jax.random.uniform(k5, (ns, ns, 1), jnp.float32, -1, 1) / jnp.sqrt(ns)
    b3 = jax.random.uniform(k6, (ns,), jnp.float32, -1, 1) / jnp.sqrt(ns)

    ref = reference(x, w1, b1, w2, b2, w3, b3)

    # 1) default tiling (whole batch fits in a single block)
    out1 = jax.block_until_ready(statis_attention(x, w1, b1, w2, b2, w3, b3))
    assert out1.shape == (B, nc, ns)
    assert jnp.allclose(out1, ref, atol=1e-4, rtol=1e-4), "mismatch (single block)"

    # 2) force small batch tiles -> multi-step pipelined grid (exercises double buffering)
    out2 = jax.block_until_ready(
        statis_attention(x, w1, b1, w2, b2, w3, b3, batch_block_bytes=4096))
    assert jnp.allclose(out2, ref, atol=1e-4, rtol=1e-4), "mismatch (tiled grid)"

    print("KERNEL_OK")
</pallas_src>

<mosaic_0001>
module attributes {stable_mosaic.version = 11 : i64} {
  func.func @statis_attention_kernel(%arg0: i32, %arg1: memref<16x160xf32, #tpu.memory_space<vmem>>, %arg2: memref<160x5xf32, #tpu.memory_space<vmem>>, %arg3: memref<5x5xf32, #tpu.memory_space<vmem>>, %arg4: memref<1x5xf32, #tpu.memory_space<vmem>>, %arg5: memref<5x160xf32, #tpu.memory_space<vmem>>, %arg6: memref<16x160xf32, #tpu.memory_space<vmem>>) attributes {dimension_semantics = [#tpu.dimension_semantics<parallel>], iteration_bounds = array<i64: 1>, scalar_prefetch = 0 : i64, scratch_operands = 0 : i64, tpu.core_type = #tpu.core_type<tc>, window_params = [{transform_indices = @transform_0, window_bounds = array<i64: 16, 160>}, {pipeline_mode = #tpu.pipeline_mode<synchronous>, transform_indices = @transform_1, window_bounds = array<i64: 160, 5>}, {pipeline_mode = #tpu.pipeline_mode<synchronous>, transform_indices = @transform_2, window_bounds = array<i64: 5, 5>}, {pipeline_mode = #tpu.pipeline_mode<synchronous>, transform_indices = @transform_3, window_bounds = array<i64: 1, 5>}, {pipeline_mode = #tpu.pipeline_mode<synchronous>, transform_indices = @transform_4, window_bounds = array<i64: 5, 160>}, {transform_indices = @transform_5, window_bounds = array<i64: 16, 160>}]} {
    %c0 = arith.constant 0 : index
    %c0_0 = arith.constant 0 : index
    %0 = vector.load %arg1[%c0, %c0_0] : memref<16x160xf32, #tpu.memory_space<vmem>>, vector<16x160xf32>
    %c0_1 = arith.constant 0 : index
    %c0_2 = arith.constant 0 : index
    %1 = vector.load %arg2[%c0_1, %c0_2] : memref<160x5xf32, #tpu.memory_space<vmem>>, vector<160x5xf32>
    %cst = arith.constant dense<0.000000e+00> : vector<16x5xf32>
    %2 = tpu.matmul %0, %1, %cst {dimension_numbers = #tpu.dot_dimension_numbers<[1], [0], [0], [1], [0, 0, 1, 1], [], []>} : vector<16x160xf32>, vector<160x5xf32>, vector<16x5xf32> -> vector<16x5xf32>
    %c0_3 = arith.constant 0 : index
    %c0_4 = arith.constant 0 : index
    %3 = vector.load %arg3[%c0_3, %c0_4] : memref<5x5xf32, #tpu.memory_space<vmem>>, vector<5x5xf32>
    %cst_5 = arith.constant dense<0.000000e+00> : vector<16x5xf32>
    %4 = tpu.matmul %2, %3, %cst_5 {dimension_numbers = #tpu.dot_dimension_numbers<[1], [0], [0], [1], [0, 0, 1, 1], [], []>} : vector<16x5xf32>, vector<5x5xf32>, vector<16x5xf32> -> vector<16x5xf32>
    %c0_6 = arith.constant 0 : index
    %c0_7 = arith.constant 0 : index
    %5 = vector.load %arg4[%c0_6, %c0_7] : memref<1x5xf32, #tpu.memory_space<vmem>>, vector<1x5xf32>
    %6 = vector.broadcast %5 : vector<1x5xf32> to vector<16x5xf32>
    %7 = arith.addf %4, %6 : vector<16x5xf32>
    %cst_8 = arith.constant 0.000000e+00 : f32
    %8 = vector.broadcast %cst_8 : f32 to vector<16x5xf32>
    %9 = arith.subf %8, %7 : vector<16x5xf32>
    %10 = math.exp %9 : vector<16x5xf32>
    %cst_9 = arith.constant 1.000000e+00 : f32
    %11 = vector.broadcast %cst_9 : f32 to vector<16x5xf32>
    %12 = arith.addf %11, %10 : vector<16x5xf32>
    %cst_10 = arith.constant 1.000000e+00 : f32
    %13 = vector.broadcast %cst_10 : f32 to vector<16x5xf32>
    %14 = arith.divf %13, %12 : vector<16x5xf32>
    %c0_11 = arith.constant 0 : index
    %c0_12 = arith.constant 0 : index
    %15 = vector.load %arg5[%c0_11, %c0_12] : memref<5x160xf32, #tpu.memory_space<vmem>>, vector<5x160xf32>
    %cst_13 = arith.constant dense<0.000000e+00> : vector<16x160xf32>
    %16 = tpu.matmul %14, %15, %cst_13 {dimension_numbers = #tpu.dot_dimension_numbers<[1], [0], [0], [1], [0, 0, 1, 1], [], []>} : vector<16x5xf32>, vector<5x160xf32>, vector<16x160xf32> -> vector<16x160xf32>
    %c0_14 = arith.constant 0 : index
    %c0_15 = arith.constant 0 : index
    %17 = vector.load %arg1[%c0_14, %c0_15] : memref<16x160xf32, #tpu.memory_space<vmem>>, vector<16x160xf32>
    %18 = arith.mulf %17, %16 : vector<16x160xf32>
    %c0_16 = arith.constant 0 : index
    %c0_17 = arith.constant 0 : index
    %19 = vector.load %arg6[%c0_16, %c0_17] : memref<16x160xf32, #tpu.memory_space<vmem>>, vector<16x160xf32>
    tpu.vector_store %arg6[%c0_16, %c0_17], %18 {strides = array<i32>} : memref<16x160xf32, #tpu.memory_space<vmem>>, vector<16x160xf32>,
    return
  }
  func.func @transform_0(%arg0: i32) -> (i32, i32) {
    %c0_i32 = arith.constant 0 : i32
    %c0_i32_0 = arith.constant 0 : i32
    return %arg0, %c0_i32 : i32, i32
  }
  func.func @transform_1(%arg0: i32) -> (i32, i32) {
    %c0_i32 = arith.constant 0 : i32
    %c0_i32_0 = arith.constant 0 : i32
    %c0_i32_1 = arith.constant 0 : i32
    return %c0_i32, %c0_i32_0 : i32, i32
  }
  func.func @transform_2(%arg0: i32) -> (i32, i32) {
    %c0_i32 = arith.constant 0 : i32
    %c0_i32_0 = arith.constant 0 : i32
    %c0_i32_1 = arith.constant 0 : i32
    return %c0_i32, %c0_i32_0 : i32, i32
  }
  func.func @transform_3(%arg0: i32) -> (i32, i32) {
    %c0_i32 = arith.constant 0 : i32
    %c0_i32_0 = arith.constant 0 : i32
    %c0_i32_1 = arith.constant 0 : i32
    return %c0_i32, %c0_i32_0 : i32, i32
  }
  func.func @transform_4(%arg0: i32) -> (i32, i32) {
    %c0_i32 = arith.constant 0 : i32
    %c0_i32_0 = arith.constant 0 : i32
    %c0_i32_1 = arith.constant 0 : i32
    return %c0_i32, %c0_i32_0 : i32, i32
  }
  func.func @transform_5(%arg0: i32) -> (i32, i32) {
    %c0_i32 = arith.constant 0 : i32
    %c0_i32_0 = arith.constant 0 : i32
    return %arg0, %c0_i32 : i32, i32
  }
}

</mosaic_0001>

<llo_original>
// kernel: tpu_custom_call.1
$region0: #{tpu_custom_call.1}
  #allocation0 [shape = 'u32[]', space=smem, size = 0x4, offset = 0x4, fixed_abs, tag = 'smem constant byte address 0x4 - core index']
  #allocation1 [shape = 'u32[144,128]{1,0:T(1,128)}', space=vmem, size = 0x12000, scoped, tag = 'internal scratch']
  %s0 = inlined_call_operand.vmem [shape: f32[16,160], index: 0, kind: input, shape index: {}]
  %s1 = inlined_call_operand.vmem [shape: f32[160,5], index: 1, kind: input, shape index: {}]
  %s2 = inlined_call_operand.vmem [shape: f32[5,5], index: 2, kind: input, shape index: {}]
  %s3 = inlined_call_operand.vmem [shape: f32[1,5], index: 3, kind: input, shape index: {}]
  %s4 = inlined_call_operand.vmem [shape: f32[5,160], index: 4, kind: input, shape index: {}]
  %s5 = inlined_call_operand.hbm [shape: f32[16,160], index: 5, kind: output, shape index: {}]
  %s6 = sld [smem:[#allocation0]]
  $region30: #{tpu_custom_call.1} parent=0
    _
  %s8 = ssub.s32 1, %s6
  %s9 = scalar_select 0, %s8, %s6
  $region1: #{tpu_custom_call.1} parent=0
    #allocation2 [shape = 'u8[16384]{0}', space=vmem, size = 0x4000, scoped, tag = 'output window, operand 0, single buffered']
    #allocation3 [shape = 's32[1]{0}', space=sflag, size = 0x4, scoped, tag = 'scoped memory for tpu_custom_call.1']
    %10 = vsyncpa [#allocation3], 0
    // Predicated region
    $region2: #{tpu_custom_call.1} parent=1 // pred_check
      _
    $region3: #{tpu_custom_call.1} parent=1 // pred_check_branch
      %12 = sbr.rel (0) target = $region5
    $region4: #{tpu_custom_call.1} parent=1 // pred_region
      _
    $region5: #{tpu_custom_call.1} parent=1 // pred_fallthru
      _
    // Predicated region
    $region6: #{tpu_custom_call.1} parent=1 // pred_check
      _
    $region7: #{tpu_custom_call.1} parent=1 // pred_check_branch
      %14 = sbr.rel (0) target = $region9
    $region8: #{tpu_custom_call.1} parent=1 // pred_region
      _
    $region9: #{tpu_custom_call.1} parent=1 // pred_fallthru
      _
    // Predicated region
    $region10: #{tpu_custom_call.1} parent=1 // pred_check
      _
    $region11: #{tpu_custom_call.1} parent=1 // pred_check_branch
      %16 = sbr.rel (0) target = $region13
    $region12: #{tpu_custom_call.1} parent=1 // pred_region
      _
    $region13: #{tpu_custom_call.1} parent=1 // pred_fallthru
      _
    // Predicated region
    $region14: #{tpu_custom_call.1} parent=1 // pred_check
      _
    $region15: #{tpu_custom_call.1} parent=1 // pred_check_branch
      %18 = sbr.rel (0) target = $region17
    $region16: #{tpu_custom_call.1} parent=1 // pred_region
      _
    $region17: #{tpu_custom_call.1} parent=1 // pred_fallthru
      _
    // Predicated region
    $region18: #{tpu_custom_call.1} parent=1 // pred_check
      _
    $region19: #{tpu_custom_call.1} parent=1 // pred_check_branch
      %20 = sbr.rel (0) target = $region21
    $region20: #{tpu_custom_call.1} parent=1 // pred_region
      _
    $region21: #{tpu_custom_call.1} parent=1 // pred_fallthru
      _
    %v21 = vld [vmem:[%s0] sm:$0xff]
    %v22 = vld [vmem:[%s0 + $0x8] sm:$0xff]
    %v23 = vld [vmem:[%s0 + $0x10] sm:$0xff]
    %v24 = vld [vmem:[%s0 + $0x18] sm:$0xff]
    %v25 = vld [vmem:[%s1] sm:$0xff]
    %v26 = vld [vmem:[%s1 + $0x8] sm:$0xff]
    %v27 = vld [vmem:[%s1 + $0x10] sm:$0xff]
    %v28 = vld [vmem:[%s1 + $0x18] sm:$0xff]
    %v29 = vld [vmem:[%s1 + $0x20] sm:$0xff]
    %v30 = vld [vmem:[%s1 + $0x28] sm:$0xff]
    %v31 = vld [vmem:[%s1 + $0x30] sm:$0xff]
    %v32 = vld [vmem:[%s1 + $0x38] sm:$0xff]
    %v33 = vld [vmem:[%s1 + $0x40] sm:$0xff]
    %v34 = vld [vmem:[%s1 + $0x48] sm:$0xff]
    %v35 = vld [vmem:[%s1 + $0x50] sm:$0xff]
    %v36 = vld [vmem:[%s1 + $0x58] sm:$0xff]
    %v37 = vld [vmem:[%s1 + $0x60] sm:$0xff]
    %v38 = vld [vmem:[%s1 + $0x68] sm:$0xff]
    %v39 = vld [vmem:[%s1 + $0x70] sm:$0xff]
    %v40 = vld [vmem:[%s1 + $0x78] sm:$0xff]
    %v41 = vld [vmem:[%s1 + $0x80] sm:$0xff]
    %v42 = vld [vmem:[%s1 + $0x88] sm:$0xff]
    %v43 = vld [vmem:[%s1 + $0x90] sm:$0xff]
    %v44 = vld [vmem:[%s1 + $0x98] sm:$0xff]
    %vm45 = vcmask 261120
    %v47 = vsel %vm45, %v22, 0
    %v50 = vsel %vm45, %v24, 0
    %52 = vmatprep.subr.mxu0 0.0
    %53 = vmatpush1.msra.mxu0 %v25
    %54 = vmatprep.subr.mxu0 0.0
    %55 = vmatpush1.msra.mxu0 %v26
    %56 = vmatprep.subr.mxu0 0.0
    %57 = vmatpush1.msra.mxu0 %v27
    %58 = vmatprep.subr.mxu0 0.0
    %59 = vmatpush1.msra.mxu0 %v28
    %60 = vmatprep.subr.mxu0 0.0
    %61 = vmatpush1.msra.mxu0 %v29
    %62 = vmatprep.subr.mxu0 0.0
    %63 = vmatpush1.msra.mxu0 %v30
    %64 = vmatprep.subr.mxu0 0.0
    %65 = vmatpush1.msra.mxu0 %v31
    %66 = vmatprep.subr.mxu0 0.0
    %67 = vmatpush1.msra.mxu0 %v32
    %68 = vmatprep.subr.mxu0 0.0
    %69 = vmatpush1.msra.mxu0 %v33
    %70 = vmatprep.subr.mxu0 0.0
    %71 = vmatpush1.msra.mxu0 %v34
    %72 = vmatprep.subr.mxu0 0.0
    %73 = vmatpush1.msra.mxu0 %v35
    %74 = vmatprep.subr.mxu0 0.0
    %75 = vmatpush1.msra.mxu0 %v36
    %76 = vmatprep.subr.mxu0 0.0
    %77 = vmatpush1.msra.mxu0 %v37
    %78 = vmatprep.subr.mxu0 0.0
    %79 = vmatpush1.msra.mxu0 %v38
    %80 = vmatprep.subr.mxu0 0.0
    %81 = vmatpush1.msra.mxu0 %v39
    %82 = vmatprep.subr.mxu0 0.0
    %83 = vmatpush1.msra.mxu0 %v40
    %84 = vmatprep.subr.mxu0 0.0
    %85 = vmatpush1.msra.mxu0 %v41
    %86 = vmatprep.subr.mxu0 0.0
    %87 = vmatpush1.msra.mxu0 %v42
    %88 = vmatprep.subr.mxu0 0.0
    %89 = vmatpush1.msra.mxu0 %v43
    %90 = vmatprep.subr.mxu0 0.0
    %91 = vmatpush1.msra.mxu0 %v44
    %92 = vmatprep.subr.mxu0 0.0
    %93 = vmatpush1.msra.mxu0 0.0
    %94 = vmatprep.subr.mxu0 0.0
    %95 = vmatpush1.msra.mxu0 0.0
    %96 = vmatprep.subr.mxu0 0.0
    %97 = vmatpush1.msra.mxu0 0.0
    %98 = vmatprep.subr.mxu0 0.0
    %99 = vmatpush1.msra.mxu0 0.0
    %100 = vmatprep.subr.mxu0 0.0
    %101 = vmatpush1.msra.mxu0 0.0
    %102 = vmatprep.subr.mxu0 0.0
    %103 = vmatpush1.msra.mxu0 0.0
    %104 = vmatprep.subr.mxu0 0.0
    %105 = vmatpush1.msra.mxu0 0.0
    %106 = vmatprep.subr.mxu0 0.0
    %107 = vmatpush1.msra.mxu0 0.0
    %108 = vmatprep.subr.mxu0 0.0
    %109 = vmatpush1.msra.mxu0 0.0
    %110 = vmatprep.subr.mxu0 0.0
    %111 = vmatpush1.msra.mxu0 0.0
    %112 = vmatprep.subr.mxu0 0.0
    %113 = vmatpush1.msra.mxu0 0.0
    %114 = vmatprep.subr.mxu0 0.0
    %115 = vmatpush1.msra.mxu0 0.0
    %116 = vmatprep.mubr.f32.mxu0 %v47
    %117 = vmatmul.mubr.f32.gmra.mrb[0].mxu0 %v21
    %v118 = vpop.f32.mrb[0].mxu0
    %v119 = vadd.f32 0.0, %v118
    %v120 = vpop.f32.mrb[0].mxu0
    %121 = vmatprep.mubr.f32.mxu0 %v50
    %122 = vmatmul.mubr.f32.gmra.mrb[0].mxu0 %v23
    %v123 = vpop.f32.mrb[0].mxu0
    %v124 = vadd.f32 0.0, %v123
    %v125 = vpop.f32.mrb[0].mxu0
    %126 = vdwg.mxu0
    %v127 = vld [vmem:[%s2] sm:$0x1f]
    %v128 = vld [vmem:[%s3] sm:$0x1]
    %v130 = vlaneseq
    %v131 = vshrl.u32 %v130, 7
    %v132 = vsub.s32 0, %v131
    %v133 = vrot.slane %v128, %v132
    %vm135 = vcmask 39936
    %v137 = vsel %vm135, %v119, 0
    %v140 = vsel %vm135, %v124, 0
    %vm142 = vcmask 1044480
    %v144 = vsel %vm142, %v127, 0
    %146 = vmatprep.subr.mxu0 0.0
    %147 = vmatpush1.msra.mxu0 %v144
    %148 = vmatprep.subr.mxu0 0.0
    %149 = vmatpush1.msra.mxu0 0.0
    %150 = vmatprep.subr.mxu0 0.0
    %151 = vmatpush1.msra.mxu0 0.0
    %152 = vmatprep.subr.mxu0 0.0
    %153 = vmatpush1.msra.mxu0 0.0
    %154 = vmatprep.subr.mxu0 0.0
    %155 = vmatpush1.msra.mxu0 0.0
    %156 = vmatprep.subr.mxu0 0.0
    %157 = vmatpush1.msra.mxu0 0.0
    %158 = vmatprep.subr.mxu0 0.0
    %159 = vmatpush1.msra.mxu0 0.0
    %160 = vmatprep.subr.mxu0 0.0
    %161 = vmatpush1.msra.mxu0 0.0
    %162 = vmatprep.subr.mxu0 0.0
    %163 = vmatpush1.msra.mxu0 0.0
    %164 = vmatprep.subr.mxu0 0.0
    %165 = vmatpush1.msra.mxu0 0.0
    %166 = vmatprep.subr.mxu0 0.0
    %167 = vmatpush1.msra.mxu0 0.0
    %168 = vmatprep.subr.mxu0 0.0
    %169 = vmatpush1.msra.mxu0 0.0
    %170 = vmatprep.subr.mxu0 0.0
    %171 = vmatpush1.msra.mxu0 0.0
    %172 = vmatprep.subr.mxu0 0.0
    %173 = vmatpush1.msra.mxu0 0.0
    %174 = vmatprep.subr.mxu0 0.0
    %175 = vmatpush1.msra.mxu0 0.0
    %176 = vmatprep.subr.mxu0 0.0
    %177 = vmatpush1.msra.mxu0 0.0
    %178 = vmatprep.subr.mxu0 0.0
    %179 = vmatpush1.msra.mxu0 0.0
    %180 = vmatprep.subr.mxu0 0.0
    %181 = vmatpush1.msra.mxu0 0.0
    %182 = vmatprep.subr.mxu0 0.0
    %183 = vmatpush1.msra.mxu0 0.0
    %184 = vmatprep.subr.mxu0 0.0
    %185 = vmatpush1.msra.mxu0 0.0
    %186 = vmatprep.subr.mxu0 0.0
    %187 = vmatpush1.msra.mxu0 0.0
    %188 = vmatprep.subr.mxu0 0.0
    %189 = vmatpush1.msra.mxu0 0.0
    %190 = vmatprep.subr.mxu0 0.0
    %191 = vmatpush1.msra.mxu0 0.0
    %192 = vmatprep.subr.mxu0 0.0
    %193 = vmatpush1.msra.mxu0 0.0
    %194 = vmatprep.subr.mxu0 0.0
    %195 = vmatpush1.msra.mxu0 0.0
    %196 = vmatprep.subr.mxu0 0.0
    %197 = vmatpush1.msra.mxu0 0.0
    %198 = vmatprep.subr.mxu0 0.0
    %199 = vmatpush1.msra.mxu0 0.0
    %200 = vmatprep.subr.mxu0 0.0
    %201 = vmatpush1.msra.mxu0 0.0
    %202 = vmatprep.subr.mxu0 0.0
    %203 = vmatpush1.msra.mxu0 0.0
    %204 = vmatprep.subr.mxu0 0.0
    %205 = vmatpush1.msra.mxu0 0.0
    %206 = vmatprep.subr.mxu0 0.0
    %207 = vmatpush1.msra.mxu0 0.0
    %208 = vmatprep.subr.mxu0 0.0
    %209 = vmatpush1.msra.mxu0 0.0
    %210 = vmatprep.mubr.f32.mxu0 0.0
    %211 = vmatmul.mubr.f32.gmra.mrb[0].mxu0 %v137
    %v212 = vpop.f32.mrb[0].mxu0
    %v213 = vadd.f32 %v133, %v212
    %v214 = vpop.f32.mrb[0].mxu0
    %215 = vmatprep.mubr.f32.mxu0 0.0
    %216 = vmatmul.mubr.f32.gmra.mrb[0].mxu0 %v140
    %v217 = vpop.f32.mrb[0].mxu0
    %v218 = vadd.f32 %v133, %v217
    %v219 = vpop.f32.mrb[0].mxu0
    %220 = vdwg.mxu0
    %v221 = vsub.f32 0.0, %v213
    %v222 = vsub.f32 0.0, %v218
    %v223 = vmul.f32 %v221, 1.442695
    %v224 = vpow.pop %v223
    %v225 = vmul.f32 %v222, 1.442695
    %v226 = vpow.pop %v225
    %v227 = vadd.f32 %v224, 1.0
    %v228 = vadd.f32 %v226, 1.0
    %v229 = vrcp.pop %v227
    %v230 = vmul.f32 1.0, %v229
    %v231 = vrcp.pop %v228
    %v232 = vmul.f32 1.0, %v231
    %v233 = vld [vmem:[%s4] sm:$0x1f]
    %v234 = vld [vmem:[%s4 + $0x8] sm:$0x1f]
    %v236 = vsel %vm135, %v230, 0
    %v239 = vsel %vm135, %v232, 0
    %v242 = vsel %vm142, %v233, 0
    %v245 = vsel %vm142, %v234, 0
    %247 = vmatprep.subr.mxu0 %v245
    %248 = vmatpush1.msra.mxu0 %v242
    %249 = vmatprep.subr.mxu0 0.0
    %250 = vmatpush1.msra.mxu0 0.0
    %251 = vmatprep.subr.mxu0 0.0
    %252 = vmatpush1.msra.mxu0 0.0
    %253 = vmatprep.subr.mxu0 0.0
    %254 = vmatpush1.msra.mxu0 0.0
    %255 = vmatprep.subr.mxu0 0.0
    %256 = vmatpush1.msra.mxu0 0.0
    %257 = vmatprep.subr.mxu0 0.0
    %258 = vmatpush1.msra.mxu0 0.0
    %259 = vmatprep.subr.mxu0 0.0
    %260 = vmatpush1.msra.mxu0 0.0
    %261 = vmatprep.subr.mxu0 0.0
    %262 = vmatpush1.msra.mxu0 0.0
    %263 = vmatprep.subr.mxu0 0.0
    %264 = vmatpush1.msra.mxu0 0.0
    %265 = vmatprep.subr.mxu0 0.0
    %266 = vmatpush1.msra.mxu0 0.0
    %267 = vmatprep.subr.mxu0 0.0
    %268 = vmatpush1.msra.mxu0 0.0
    %269 = vmatprep.subr.mxu0 0.0
    %270 = vmatpush1.msra.mxu0 0.0
    %271 = vmatprep.subr.mxu0 0.0
    %272 = vmatpush1.msra.mxu0 0.0
    %273 = vmatprep.subr.mxu0 0.0
    %274 = vmatpush1.msra.mxu0 0.0
    %275 = vmatprep.subr.mxu0 0.0
    %276 = vmatpush1.msra.mxu0 0.0
    %277 = vmatprep.subr.mxu0 0.0
    %278 = vmatpush1.msra.mxu0 0.0
    %279 = vmatprep.subr.mxu0 0.0
    %280 = vmatpush1.msra.mxu0 0.0
    %281 = vmatprep.subr.mxu0 0.0
    %282 = vmatpush1.msra.mxu0 0.0
    %283 = vmatprep.subr.mxu0 0.0
    %284 = vmatpush1.msra.mxu0 0.0
    %285 = vmatprep.subr.mxu0 0.0
    %286 = vmatpush1.msra.mxu0 0.0
    %287 = vmatprep.subr.mxu0 0.0
    %288 = vmatpush1.msra.mxu0 0.0
    %289 = vmatprep.subr.mxu0 0.0
    %290 = vmatpush1.msra.mxu0 0.0
    %291 = vmatprep.subr.mxu0 0.0
    %292 = vmatpush1.msra.mxu0 0.0
    %293 = vmatprep.subr.mxu0 0.0
    %294 = vmatpush1.msra.mxu0 0.0
    %295 = vmatprep.subr.mxu0 0.0
    %296 = vmatpush1.msra.mxu0 0.0
    %297 = vmatprep.subr.mxu0 0.0
    %298 = vmatpush1.msra.mxu0 0.0
    %299 = vmatprep.subr.mxu0 0.0
    %300 = vmatpush1.msra.mxu0 0.0
    %301 = vmatprep.subr.mxu0 0.0
    %302 = vmatpush1.msra.mxu0 0.0
    %303 = vmatprep.subr.mxu0 0.0
    %304 = vmatpush1.msra.mxu0 0.0
    %305 = vmatprep.subr.mxu0 0.0
    %306 = vmatpush1.msra.mxu0 0.0
    %307 = vmatprep.subr.mxu0 0.0
    %308 = vmatpush1.msra.mxu0 0.0
    %309 = vmatprep.subr.mxu0 0.0
    %310 = vmatpush1.msra.mxu0 0.0
    %311 = vmatprep.mubr.f32.mxu0 0.0
    %312 = vmatmul.mubr.f32.gmra.mrb[0].mxu0 %v236
    %v313 = vpop.f32.mrb[0].mxu0
    %v314 = vadd.f32 0.0, %v313
    %v315 = vpop.f32.mrb[0].mxu0
    %v316 = vadd.f32 0.0, %v315
    %317 = vmatprep.mubr.f32.mxu0 0.0
    %318 = vmatmul.mubr.f32.gmra.mrb[0].mxu0 %v239
    %v319 = vpop.f32.mrb[0].mxu0
    %v320 = vadd.f32 0.0, %v319
    %v321 = vpop.f32.mrb[0].mxu0
    %v322 = vadd.f32 0.0, %v321
    %323 = vdwg.mxu0
    %v324 = vmul.f32 %v21, %v314
    %v325 = vmul.f32 %v22, %v316
    %v326 = vmul.f32 %v23, %v320
    %v327 = vmul.f32 %v24, %v322
    %328 = vst [vmem:[#allocation2] sm:$0xff] %v324
    %329 = vst.msk [vmem:[#allocation2 + $0x8] sm:$0xff] %vm45, %v325
    %330 = vst [vmem:[#allocation2 + $0x10] sm:$0xff] %v326
    %331 = vst.msk [vmem:[#allocation2 + $0x18] sm:$0xff] %vm45, %v327
    // Predicated region
    $region22: #{tpu_custom_call.1} parent=1 // pred_check
      _
    $region23: #{tpu_custom_call.1} parent=1 // pred_check_branch
      %333 = sbr.rel (0) target = $region25
    $region24: #{tpu_custom_call.1} parent=1 // pred_region
      %s335 = ssub.s32 512, 512
      %336 = vsyncadd [#allocation3], %s335
      %s337 = sshll.u32 [#allocation2], 4
      %s338 = int_to_ptr.vmem [resolvable:$true] %s337
      %343 = dma.vmem_to_hbm [thread:$0]  %s338, 512, %s5, [#allocation3], 256, 256, 16
    $region25: #{tpu_custom_call.1} parent=1 // pred_fallthru
      _
    // Predicated region
    $region26: #{tpu_custom_call.1} parent=1 // pred_check
      _
    $region27: #{tpu_custom_call.1} parent=1 // pred_check_branch
      %345 = sbr.rel (0) target = $region29
    $region28: #{tpu_custom_call.1} parent=1 // pred_region
      %346 = dma.done [#allocation3], 512
    $region29: #{tpu_custom_call.1} parent=1 // pred_fallthru
      _
    %347 = vsyncpa [#allocation3], 1

</llo_original>
